<compile_context>
chip_gen: v6e
topology: v6e:2x2x1
jax: 0.10.0
libtpu: 0.0.40
codegen_flags: <defaults>
</compile_context>

<pallas_src>
import math

import jax
import jax.numpy as jnp
from jax.experimental import pallas as pl
from jax.experimental.pallas import tpu as pltpu


def _round_up(x, m):
    return ((x + m - 1) // m) * m


def critic_kernel(s_ref, a_ref, g_ref,
                  w1s_ref, w1a_ref, w1g_ref, b1_ref,
                  w2_ref, b2_ref, w3_ref, b3_ref,
                  o_ref):
    # Matmul operands in bf16 (MXU consumes bf16 natively on v5e/v6e/v7x),
    # accumulation and all elementwise work in f32.
    s = s_ref[...].astype(jnp.bfloat16)
    a = a_ref[...].astype(jnp.bfloat16)
    g = g_ref[...].astype(jnp.bfloat16)

    # Layer 1: fused "concat" as three partial matmuls accumulated in f32.
    h1 = (jnp.dot(s, w1s_ref[...], preferred_element_type=jnp.float32)
          + jnp.dot(a, w1a_ref[...], preferred_element_type=jnp.float32)
          + jnp.dot(g, w1g_ref[...], preferred_element_type=jnp.float32)
          + b1_ref[...])
    h1 = jnp.maximum(h1, 0.0)                         # ReLU (f32, VPU)

    # Layer 2
    h2 = jnp.dot(h1.astype(jnp.bfloat16), w2_ref[...],
                 preferred_element_type=jnp.float32) + b2_ref[...]
    h2 = jnp.maximum(h2, 0.0)                         # ReLU (f32, VPU)

    # Layer 3 (no activation; single unbounded Q value per row)
    o_ref[...] = jnp.dot(h2.astype(jnp.bfloat16), w3_ref[...],
                         preferred_element_type=jnp.float32) + b3_ref[...]


def critic_forward(state, action, goal, params):
    """state: [B, Sd], action: [B, Ad], goal: [B, Gd] -> Q: [B, 1]."""
    w1s, w1a, w1g, b1, w2, b2, w3, b3 = params
    state = state.astype(jnp.float32)
    action = action.astype(jnp.float32)
    goal = goal.astype(jnp.float32)

    B = state.shape[0]
    state_dim = state.shape[1]
    action_dim = action.shape[1]
    goal_dim = goal.shape[1]

    # Batch tile: multiple of 8 sublanes, capped so resident weights +
    # double-buffered activation tiles stay far under VMEM on every gen.
    TB = min(256, _round_up(B, 8))
    Bp = _round_up(B, TB)
    pad = Bp - B
    if pad:
        state = jnp.pad(state, ((0, pad), (0, 0)))
        action = jnp.pad(action, ((0, pad), (0, 0)))
        goal = jnp.pad(goal, ((0, pad), (0, 0)))

    grid = (Bp // TB,)

    def act_spec(d):
        return pl.BlockSpec((TB, d), lambda i: (i, 0))

    def resident_spec(shape):
        # Constant block index -> weight tile stays in VMEM across grid steps.
        return pl.BlockSpec(shape, lambda i: (0, 0))

    out = pl.pallas_call(
        critic_kernel,
        out_shape=jax.ShapeDtypeStruct((Bp, 1), jnp.float32),
        grid=grid,
        in_specs=[
            act_spec(state_dim), act_spec(action_dim), act_spec(goal_dim),
            resident_spec(w1s.shape), resident_spec(w1a.shape),
            resident_spec(w1g.shape), resident_spec(b1.shape),
            resident_spec(w2.shape), resident_spec(b2.shape),
            resident_spec(w3.shape), resident_spec(b3.shape),
        ],
        out_specs=pl.BlockSpec((TB, 1), lambda i: (i, 0)),
        compiler_params=pltpu.CompilerParams(
            dimension_semantics=("parallel",)),   # shards batch across TCs on v7x
    )(state, action, goal, w1s, w1a, w1g, b1, w2, b2, w3, b3)

    return out[:B]


def init_critic_params(key, state_dim, action_dim, goal_dim, hidden_dim=256):
    """Mirrors the PyTorch module: xavier_uniform_ weights, zero biases.

    Weights are stored [in, out] (transposed vs torch) and kept in bf16;
    biases stay f32. The full W1 is sampled with the combined fan_in and then
    split per input so the distribution matches xavier on the concat layer.
    """
    in_dim = state_dim + action_dim + goal_dim
    k1, k2, k3 = jax.random.split(key, 3)

    def xavier_uniform(k, fan_in, fan_out):
        bound = math.sqrt(6.0 / (fan_in + fan_out))
        return jax.random.uniform(k, (fan_in, fan_out), jnp.float32, -bound, bound)

    w1 = xavier_uniform(k1, in_dim, hidden_dim)
    w1s = w1[:state_dim]
    w1a = w1[state_dim:state_dim + action_dim]
    w1g = w1[state_dim + action_dim:]
    b1 = jnp.zeros((1, hidden_dim), jnp.float32)

    w2 = xavier_uniform(k2, hidden_dim, hidden_dim)
    b2 = jnp.zeros((1, hidden_dim), jnp.float32)

    w3 = xavier_uniform(k3, hidden_dim, 1)
    b3 = jnp.zeros((1, 1), jnp.float32)

    bf16 = lambda w: w.astype(jnp.bfloat16)
    return (bf16(w1s), bf16(w1a), bf16(w1g), b1, bf16(w2), b2, bf16(w3), b3)


if __name__ == "__main__":
    # FetchReach-like dims: state=10, action=4, goal=3, hidden=256; small batch.
    B, state_dim, action_dim, goal_dim, hidden = 8, 10, 4, 3, 256

    key = jax.random.PRNGKey(0)
    kp, ks, ka, kg = jax.random.split(key, 4)

    params = init_critic_params(kp, state_dim, action_dim, goal_dim, hidden)
    state = jax.random.normal(ks, (B, state_dim), jnp.float32)
    action = jax.random.normal(ka, (B, action_dim), jnp.float32)
    goal = jax.random.normal(kg, (B, goal_dim), jnp.float32)

    out = critic_forward(state, action, goal, params)
    jax.block_until_ready(out)

    # Pure-JAX reference with identical bf16 matmul operands / f32 accumulation.
    w1s, w1a, w1g, b1, w2, b2, w3, b3 = params
    x = jnp.concatenate([state, action, goal], axis=-1)
    w1 = jnp.concatenate([w1s, w1a, w1g], axis=0)
    h1 = jnp.maximum(
        jnp.dot(x.astype(jnp.bfloat16), w1, preferred_element_type=jnp.float32) + b1, 0.0)
    h2 = jnp.maximum(
        jnp.dot(h1.astype(jnp.bfloat16), w2, preferred_element_type=jnp.float32) + b2, 0.0)
    ref = jnp.dot(h2.astype(jnp.bfloat16), w3, preferred_element_type=jnp.float32) + b3

    assert out.shape == (B, 1)
    assert jnp.allclose(out, ref, atol=1e-3, rtol=1e-3), (
        f"max abs err = {jnp.max(jnp.abs(out - ref))}")

    print("KERNEL_OK")
</pallas_src>

<mosaic_0001>
module attributes {stable_mosaic.version = 11 : i64} {
  func.func @critic_kernel(%arg0: i32, %arg1: memref<8x10xf32, #tpu.memory_space<vmem>>, %arg2: memref<8x4xf32, #tpu.memory_space<vmem>>, %arg3: memref<8x3xf32, #tpu.memory_space<vmem>>, %arg4: memref<10x256xbf16, #tpu.memory_space<vmem>>, %arg5: memref<4x256xbf16, #tpu.memory_space<vmem>>, %arg6: memref<3x256xbf16, #tpu.memory_space<vmem>>, %arg7: memref<1x256xf32, #tpu.memory_space<vmem>>, %arg8: memref<256x256xbf16, #tpu.memory_space<vmem>>, %arg9: memref<1x256xf32, #tpu.memory_space<vmem>>, %arg10: memref<256x1xbf16, #tpu.memory_space<vmem>>, %arg11: memref<1x1xf32, #tpu.memory_space<vmem>>, %arg12: memref<8x1xf32, #tpu.memory_space<vmem>>) attributes {dimension_semantics = [#tpu.dimension_semantics<parallel>], iteration_bounds = array<i64: 1>, scalar_prefetch = 0 : i64, scratch_operands = 0 : i64, tpu.core_type = #tpu.core_type<tc>, window_params = [{transform_indices = @transform_0, window_bounds = array<i64: 8, 10>}, {transform_indices = @transform_1, window_bounds = array<i64: 8, 4>}, {transform_indices = @transform_2, window_bounds = array<i64: 8, 3>}, {pipeline_mode = #tpu.pipeline_mode<synchronous>, transform_indices = @transform_3, window_bounds = array<i64: 10, 256>}, {pipeline_mode = #tpu.pipeline_mode<synchronous>, transform_indices = @transform_4, window_bounds = array<i64: 4, 256>}, {pipeline_mode = #tpu.pipeline_mode<synchronous>, transform_indices = @transform_5, window_bounds = array<i64: 3, 256>}, {pipeline_mode = #tpu.pipeline_mode<synchronous>, transform_indices = @transform_6, window_bounds = array<i64: 1, 256>}, {pipeline_mode = #tpu.pipeline_mode<synchronous>, transform_indices = @transform_7, window_bounds = array<i64: 256, 256>}, {pipeline_mode = #tpu.pipeline_mode<synchronous>, transform_indices = @transform_8, window_bounds = array<i64: 1, 256>}, {pipeline_mode = #tpu.pipeline_mode<synchronous>, transform_indices = @transform_9, window_bounds = array<i64: 256, 1>}, {pipeline_mode = #tpu.pipeline_mode<synchronous>, transform_indices = @transform_10, window_bounds = array<i64: 1, 1>}, {transform_indices = @transform_11, window_bounds = array<i64: 8, 1>}]} {
    %c0 = arith.constant 0 : index
    %c0_0 = arith.constant 0 : index
    %0 = vector.load %arg1[%c0, %c0_0] : memref<8x10xf32, #tpu.memory_space<vmem>>, vector<8x10xf32>
    %1 = arith.truncf %0 : vector<8x10xf32> to vector<8x10xbf16>
    %c0_1 = arith.constant 0 : index
    %c0_2 = arith.constant 0 : index
    %2 = vector.load %arg2[%c0_1, %c0_2] : memref<8x4xf32, #tpu.memory_space<vmem>>, vector<8x4xf32>
    %3 = arith.truncf %2 : vector<8x4xf32> to vector<8x4xbf16>
    %c0_3 = arith.constant 0 : index
    %c0_4 = arith.constant 0 : index
    %4 = vector.load %arg3[%c0_3, %c0_4] : memref<8x3xf32, #tpu.memory_space<vmem>>, vector<8x3xf32>
    %5 = arith.truncf %4 : vector<8x3xf32> to vector<8x3xbf16>
    %c0_5 = arith.constant 0 : index
    %c0_6 = arith.constant 0 : index
    %6 = vector.load %arg4[%c0_5, %c0_6] : memref<10x256xbf16, #tpu.memory_space<vmem>>, vector<10x256xbf16>
    %cst = arith.constant dense<0.000000e+00> : vector<8x256xf32>
    %7 = tpu.matmul %1, %6, %cst {dimension_numbers = #tpu.dot_dimension_numbers<[1], [0], [0], [1], [0, 0, 1, 1], [], []>} : vector<8x10xbf16>, vector<10x256xbf16>, vector<8x256xf32> -> vector<8x256xf32>
    %c0_7 = arith.constant 0 : index
    %c0_8 = arith.constant 0 : index
    %8 = vector.load %arg5[%c0_7, %c0_8] : memref<4x256xbf16, #tpu.memory_space<vmem>>, vector<4x256xbf16>
    %cst_9 = arith.constant dense<0.000000e+00> : vector<8x256xf32>
    %9 = tpu.matmul %3, %8, %cst_9 {dimension_numbers = #tpu.dot_dimension_numbers<[1], [0], [0], [1], [0, 0, 1, 1], [], []>} : vector<8x4xbf16>, vector<4x256xbf16>, vector<8x256xf32> -> vector<8x256xf32>
    %10 = arith.addf %7, %9 : vector<8x256xf32>
    %c0_10 = arith.constant 0 : index
    %c0_11 = arith.constant 0 : index
    %11 = vector.load %arg6[%c0_10, %c0_11] : memref<3x256xbf16, #tpu.memory_space<vmem>>, vector<3x256xbf16>
    %cst_12 = arith.constant dense<0.000000e+00> : vector<8x256xf32>
    %12 = tpu.matmul %5, %11, %cst_12 {dimension_numbers = #tpu.dot_dimension_numbers<[1], [0], [0], [1], [0, 0, 1, 1], [], []>} : vector<8x3xbf16>, vector<3x256xbf16>, vector<8x256xf32> -> vector<8x256xf32>
    %13 = arith.addf %10, %12 : vector<8x256xf32>
    %c0_13 = arith.constant 0 : index
    %c0_14 = arith.constant 0 : index
    %14 = vector.load %arg7[%c0_13, %c0_14] : memref<1x256xf32, #tpu.memory_space<vmem>>, vector<1x256xf32>
    %15 = vector.broadcast %14 : vector<1x256xf32> to vector<8x256xf32>
    %16 = arith.addf %13, %15 : vector<8x256xf32>
    %cst_15 = arith.constant 0.000000e+00 : f32
    %17 = vector.broadcast %cst_15 : f32 to vector<8x256xf32>
    %18 = arith.maximumf %16, %17 : vector<8x256xf32>
    %19 = arith.truncf %18 : vector<8x256xf32> to vector<8x256xbf16>
    %c0_16 = arith.constant 0 : index
    %c0_17 = arith.constant 0 : index
    %20 = vector.load %arg8[%c0_16, %c0_17] : memref<256x256xbf16, #tpu.memory_space<vmem>>, vector<256x256xbf16>
    %cst_18 = arith.constant dense<0.000000e+00> : vector<8x256xf32>
    %21 = tpu.matmul %19, %20, %cst_18 {dimension_numbers = #tpu.dot_dimension_numbers<[1], [0], [0], [1], [0, 0, 1, 1], [], []>} : vector<8x256xbf16>, vector<256x256xbf16>, vector<8x256xf32> -> vector<8x256xf32>
    %c0_19 = arith.constant 0 : index
    %c0_20 = arith.constant 0 : index
    %22 = vector.load %arg9[%c0_19, %c0_20] : memref<1x256xf32, #tpu.memory_space<vmem>>, vector<1x256xf32>
    %23 = vector.broadcast %22 : vector<1x256xf32> to vector<8x256xf32>
    %24 = arith.addf %21, %23 : vector<8x256xf32>
    %cst_21 = arith.constant 0.000000e+00 : f32
    %25 = vector.broadcast %cst_21 : f32 to vector<8x256xf32>
    %26 = arith.maximumf %24, %25 : vector<8x256xf32>
    %27 = arith.truncf %26 : vector<8x256xf32> to vector<8x256xbf16>
    %c0_22 = arith.constant 0 : index
    %c0_23 = arith.constant 0 : index
    %28 = vector.load %arg10[%c0_22, %c0_23] : memref<256x1xbf16, #tpu.memory_space<vmem>>, vector<256x1xbf16>
    %cst_24 = arith.constant dense<0.000000e+00> : vector<8x1xf32>
    %29 = tpu.matmul %27, %28, %cst_24 {dimension_numbers = #tpu.dot_dimension_numbers<[1], [0], [0], [1], [0, 0, 1, 1], [], []>} : vector<8x256xbf16>, vector<256x1xbf16>, vector<8x1xf32> -> vector<8x1xf32>
    %c0_25 = arith.constant 0 : index
    %c0_26 = arith.constant 0 : index
    %30 = vector.load %arg11[%c0_25, %c0_26] : memref<1x1xf32, #tpu.memory_space<vmem>>, vector<1x1xf32>
    %31 = vector.broadcast %30 : vector<1x1xf32> to vector<8x1xf32>
    %32 = arith.addf %29, %31 : vector<8x1xf32>
    %c0_27 = arith.constant 0 : index
    %c0_28 = arith.constant 0 : index
    %33 = vector.load %arg12[%c0_27, %c0_28] : memref<8x1xf32, #tpu.memory_space<vmem>>, vector<8x1xf32>
    tpu.vector_store %arg12[%c0_27, %c0_28], %32 {strides = array<i32>} : memref<8x1xf32, #tpu.memory_space<vmem>>, vector<8x1xf32>,
    return
  }
  func.func @transform_0(%arg0: i32) -> (i32, i32) {
    %c0_i32 = arith.constant 0 : i32
    %c0_i32_0 = arith.constant 0 : i32
    return %arg0, %c0_i32 : i32, i32
  }
  func.func @transform_1(%arg0: i32) -> (i32, i32) {
    %c0_i32 = arith.constant 0 : i32
    %c0_i32_0 = arith.constant 0 : i32
    return %arg0, %c0_i32 : i32, i32
  }
  func.func @transform_2(%arg0: i32) -> (i32, i32) {
    %c0_i32 = arith.constant 0 : i32
    %c0_i32_0 = arith.constant 0 : i32
    return %arg0, %c0_i32 : i32, i32
  }
  func.func @transform_3(%arg0: i32) -> (i32, i32) {
    %c0_i32 = arith.constant 0 : i32
    %c0_i32_0 = arith.constant 0 : i32
    %c0_i32_1 = arith.constant 0 : i32
    return %c0_i32, %c0_i32_0 : i32, i32
  }
  func.func @transform_4(%arg0: i32) -> (i32, i32) {
    %c0_i32 = arith.constant 0 : i32
    %c0_i32_0 = arith.constant 0 : i32
    %c0_i32_1 = arith.constant 0 : i32
    return %c0_i32, %c0_i32_0 : i32, i32
  }
  func.func @transform_5(%arg0: i32) -> (i32, i32) {
    %c0_i32 = arith.constant 0 : i32
    %c0_i32_0 = arith.constant 0 : i32
    %c0_i32_1 = arith.constant 0 : i32
    return %c0_i32, %c0_i32_0 : i32, i32
  }
  func.func @transform_6(%arg0: i32) -> (i32, i32) {
    %c0_i32 = arith.constant 0 : i32
    %c0_i32_0 = arith.constant 0 : i32
    %c0_i32_1 = arith.constant 0 : i32
    return %c0_i32, %c0_i32_0 : i32, i32
  }
  func.func @transform_7(%arg0: i32) -> (i32, i32) {
    %c0_i32 = arith.constant 0 : i32
    %c0_i32_0 = arith.constant 0 : i32
    %c0_i32_1 = arith.constant 0 : i32
    return %c0_i32, %c0_i32_0 : i32, i32
  }
  func.func @transform_8(%arg0: i32) -> (i32, i32) {
    %c0_i32 = arith.constant 0 : i32
    %c0_i32_0 = arith.constant 0 : i32
    %c0_i32_1 = arith.constant 0 : i32
    return %c0_i32, %c0_i32_0 : i32, i32
  }
  func.func @transform_9(%arg0: i32) -> (i32, i32) {
    %c0_i32 = arith.constant 0 : i32
    %c0_i32_0 = arith.constant 0 : i32
    %c0_i32_1 = arith.constant 0 : i32
    return %c0_i32, %c0_i32_0 : i32, i32
  }
  func.func @transform_10(%arg0: i32) -> (i32, i32) {
    %c0_i32 = arith.constant 0 : i32
    %c0_i32_0 = arith.constant 0 : i32
    %c0_i32_1 = arith.constant 0 : i32
    return %c0_i32, %c0_i32_0 : i32, i32
  }
  func.func @transform_11(%arg0: i32) -> (i32, i32) {
    %c0_i32 = arith.constant 0 : i32
    %c0_i32_0 = arith.constant 0 : i32
    return %arg0, %c0_i32 : i32, i32
  }
}

</mosaic_0001>

<llo_original>
// kernel: tpu_custom_call.1
$region0: #{tpu_custom_call.1}
  #allocation0 [shape = 'u32[]', space=smem, size = 0x4, offset = 0x4, fixed_abs, tag = 'smem constant byte address 0x4 - core index']
  #allocation1 [shape = 'u32[144,128]{1,0:T(1,128)}', space=vmem, size = 0x12000, scoped, tag = 'internal scratch']
  #allocation2 [shape = 'f32[1,1]{1,0:T(1,128)S(1)}', space=vmem, size = 0x200, scoped, tag = 'scoped memory for tpu_custom_call.1']
  %s0 = inlined_call_operand.vmem [shape: f32[8,10], index: 0, kind: input, shape index: {}]
  %s1 = inlined_call_operand.vmem [shape: f32[8,4], index: 1, kind: input, shape index: {}]
  %s2 = inlined_call_operand.vmem [shape: f32[8,3], index: 2, kind: input, shape index: {}]
  %s3 = inlined_call_operand.vmem [shape: bf16[10,256], index: 3, kind: input, shape index: {}]
  %s4 = inlined_call_operand.vmem [shape: bf16[4,256], index: 4, kind: input, shape index: {}]
  %s5 = inlined_call_operand.vmem [shape: bf16[3,256], index: 5, kind: input, shape index: {}]
  %s6 = inlined_call_operand.vmem [shape: f32[1,256], index: 6, kind: input, shape index: {}]
  %s7 = inlined_call_operand.hbm [shape: bf16[256,256], index: 7, kind: input, shape index: {}]
  %s8 = inlined_call_operand.vmem [shape: f32[1,256], index: 8, kind: input, shape index: {}]
  %s9 = inlined_call_operand.vmem [shape: bf16[256,1], index: 9, kind: input, shape index: {}]
  %s10 = inlined_call_operand.<no memory space> [shape: f32[1,1], index: 10, kind: input, shape index: {}]
  %s11 = inlined_call_operand.vmem [shape: f32[8,1], index: 11, kind: output, shape index: {}]
  %s12 = sld [smem:[#allocation0]]
  $region58: #{tpu_custom_call.1} parent=0
    _
  %s14 = ssub.s32 1, %s12
  %s15 = scalar_select 0, %s14, %s12
  %v16 = vstv %s10
  %17 = vst [vmem:[#allocation2] sm:$0x1] %v16
  $region1: #{tpu_custom_call.1} parent=0
    #allocation3 [shape = 'u8[131072]{0}', space=vmem, size = 0x20000, scoped, tag = 'input window, operand 7, single buffered']
    #allocation4 [shape = 's32[1]{0}', space=sflag, size = 0x4, scoped, tag = 'scoped memory for tpu_custom_call.1']
    %18 = vsyncpa [#allocation4], 0
    // Predicated region
    $region2: #{tpu_custom_call.1} parent=1 // pred_check
      _
    $region3: #{tpu_custom_call.1} parent=1 // pred_check_branch
      %20 = sbr.rel (0) target = $region5
    $region4: #{tpu_custom_call.1} parent=1 // pred_region
      _
    $region5: #{tpu_custom_call.1} parent=1 // pred_fallthru
      _
    // Predicated region
    $region6: #{tpu_custom_call.1} parent=1 // pred_check
      _
    $region7: #{tpu_custom_call.1} parent=1 // pred_check_branch
      %22 = sbr.rel (0) target = $region9
    $region8: #{tpu_custom_call.1} parent=1 // pred_region
      _
    $region9: #{tpu_custom_call.1} parent=1 // pred_fallthru
      _
    // Predicated region
    $region10: #{tpu_custom_call.1} parent=1 // pred_check
      _
    $region11: #{tpu_custom_call.1} parent=1 // pred_check_branch
      %24 = sbr.rel (0) target = $region13
    $region12: #{tpu_custom_call.1} parent=1 // pred_region
      _
    $region13: #{tpu_custom_call.1} parent=1 // pred_fallthru
      _
    // Predicated region
    $region14: #{tpu_custom_call.1} parent=1 // pred_check
      _
    $region15: #{tpu_custom_call.1} parent=1 // pred_check_branch
      %26 = sbr.rel (0) target = $region17
    $region16: #{tpu_custom_call.1} parent=1 // pred_region
      _
    $region17: #{tpu_custom_call.1} parent=1 // pred_fallthru
      _
    // Predicated region
    $region18: #{tpu_custom_call.1} parent=1 // pred_check
      _
    $region19: #{tpu_custom_call.1} parent=1 // pred_check_branch
      %28 = sbr.rel (0) target = $region21
    $region20: #{tpu_custom_call.1} parent=1 // pred_region
      _
    $region21: #{tpu_custom_call.1} parent=1 // pred_fallthru
      _
    // Predicated region
    $region22: #{tpu_custom_call.1} parent=1 // pred_check
      _
    $region23: #{tpu_custom_call.1} parent=1 // pred_check_branch
      %30 = sbr.rel (0) target = $region25
    $region24: #{tpu_custom_call.1} parent=1 // pred_region
      _
    $region25: #{tpu_custom_call.1} parent=1 // pred_fallthru
      _
    // Predicated region
    $region26: #{tpu_custom_call.1} parent=1 // pred_check
      _
    $region27: #{tpu_custom_call.1} parent=1 // pred_check_branch
      %32 = sbr.rel (0) target = $region29
    $region28: #{tpu_custom_call.1} parent=1 // pred_region
      _
    $region29: #{tpu_custom_call.1} parent=1 // pred_fallthru
      _
    // Predicated region
    $region30: #{tpu_custom_call.1} parent=1 // pred_check
      _
    $region31: #{tpu_custom_call.1} parent=1 // pred_check_branch
      %34 = sbr.rel (0) target = $region33
    $region32: #{tpu_custom_call.1} parent=1 // pred_region
      %s36 = ssub.s32 4096, 4096
      %37 = vsyncadd [#allocation4], %s36
      %s38 = sshll.u32 [#allocation3], 4
      %s39 = int_to_ptr.vmem [resolvable:$true] %s38
      %44 = dma.hbm_to_vmem [thread:$0]  %s7, 4096, %s39, [#allocation4], 128, 128, 8
    $region33: #{tpu_custom_call.1} parent=1 // pred_fallthru
      _
    // Predicated region
    $region34: #{tpu_custom_call.1} parent=1 // pred_check
      _
    $region35: #{tpu_custom_call.1} parent=1 // pred_check_branch
      %46 = sbr.rel (0) target = $region37
    $region36: #{tpu_custom_call.1} parent=1 // pred_region
      _
    $region37: #{tpu_custom_call.1} parent=1 // pred_fallthru
      _
    // Predicated region
    $region38: #{tpu_custom_call.1} parent=1 // pred_check
      _
    $region39: #{tpu_custom_call.1} parent=1 // pred_check_branch
      %48 = sbr.rel (0) target = $region41
    $region40: #{tpu_custom_call.1} parent=1 // pred_region
      _
    $region41: #{tpu_custom_call.1} parent=1 // pred_fallthru
      _
    // Predicated region
    $region42: #{tpu_custom_call.1} parent=1 // pred_check
      _
    $region43: #{tpu_custom_call.1} parent=1 // pred_check_branch
      %50 = sbr.rel (0) target = $region45
    $region44: #{tpu_custom_call.1} parent=1 // pred_region
      _
    $region45: #{tpu_custom_call.1} parent=1 // pred_fallthru
      _
    // Predicated region
    $region46: #{tpu_custom_call.1} parent=1 // pred_check
      _
    $region47: #{tpu_custom_call.1} parent=1 // pred_check_branch
      %52 = sbr.rel (0) target = $region49
    $region48: #{tpu_custom_call.1} parent=1 // pred_region
      %53 = dma.done [#allocation4], 4096
    $region49: #{tpu_custom_call.1} parent=1 // pred_fallthru
      _
    %v55 = vld [vmem:[%s0] sm:$0xff]
    %v56 = vpack.c.bf16 %v55, %v55
    %v57 = vld [vmem:[%s1] sm:$0xff]
    %v58 = vpack.c.bf16 %v57, %v57
    %v59 = vld [vmem:[%s2] sm:$0xff]
    %v60 = vpack.c.bf16 %v59, %v59
    %v61 = vld [vmem:[%s3] sm:$0xff]
    %v62 = vld [vmem:[%s3 + $0x8] sm:$0x11]
    %v63 = vld [vmem:[%s4] sm:$0xf]
    %v66 = vunpack.c.l.s4 1983009808
    %v67 = vunpack.c.0.s8 %v66
    %v68 = vlaneseq
    %v69 = vshrl.u32 %v68, 7
    %v70 = vsub.s32 %v67, %v69
    %v71 = vrot.slane %v63, %v70
    %v72 = vcombine.high %v71, %v71
    %vm73 = vcmask 31744
    %v75 = vsel %vm73, %v58, 0
    %vm77 = vcmask 1041408
    %v79 = vsel %vm77, %v71, 0
    %v82 = vsel %vm77, %v72, 0
    %84 = vmatprep.subr.bf16.mxu0 0
    %85 = vmatpush1.bf16.msra.mxu0 0
    %86 = vmatprep.subr.bf16.mxu0 0
    %87 = vmatpush1.bf16.msra.mxu0 0
    %88 = vmatprep.subr.bf16.mxu0 0
    %89 = vmatpush1.bf16.msra.mxu0 0
    %90 = vmatprep.subr.bf16.mxu0 0
    %91 = vmatpush1.bf16.msra.mxu0 0
    %92 = vmatprep.subr.bf16.mxu0 0
    %93 = vmatpush1.bf16.msra.mxu0 0
    %94 = vmatprep.subr.bf16.mxu0 0
    %95 = vmatpush1.bf16.msra.mxu0 0
    %96 = vmatprep.subr.bf16.mxu0 0
    %97 = vmatpush1.bf16.msra.mxu0 0
    %98 = vmatprep.subr.bf16.mxu0 %v82
    %99 = vmatpush1.bf16.msra.mxu0 %v79
    %100 = vmatprep.subr.bf16.mxu0 0
    %101 = vmatpush2.bf16.msra.mxu0 0
    %102 = vmatprep.subr.bf16.mxu0 0
    %103 = vmatpush2.bf16.msra.mxu0 0
    %104 = vmatprep.subr.bf16.mxu0 0
    %105 = vmatpush2.bf16.msra.mxu0 0
    %106 = vmatprep.subr.bf16.mxu0 0
    %107 = vmatpush2.bf16.msra.mxu0 0
    %108 = vmatprep.subr.bf16.mxu0 0
    %109 = vmatpush2.bf16.msra.mxu0 0
    %110 = vmatprep.subr.bf16.mxu0 0
    %111 = vmatpush2.bf16.msra.mxu0 0
    %112 = vmatprep.subr.bf16.mxu0 0
    %113 = vmatpush2.bf16.msra.mxu0 0
    %114 = vmatprep.subr.bf16.mxu0 0
    %115 = vmatpush2.bf16.msra.mxu0 0
    %116 = vmatprep.mubr.bf16.mxu0 0
    %117 = vmatmul.mubr.bf16.gmra.mxu0 %v75
    %v118 = vpop.f32.mrf.mxu0
    %v119 = vadd.f32 0.0, %v118
    %v120 = vpop.f32.mrf.mxu0
    %v121 = vadd.f32 0.0, %v120
    %v122 = vpop.f32.mrf.mxu0
    %v123 = vpop.f32.mrf.mxu0
    %124 = vdwg.mxu0
    %v127 = vunpack.c.l.b16 %v61
    %v128 = vunpack.c.h.b16 %v61
    %v129 = vunpack.c.l.b16 %v62
    %v130 = vunpack.c.h.b16 %v62
    %v131 = vpack.c.b16 %v129, %v127
    %v132 = vpack.c.b16 %v130, %v128
    %vm133 = vcmask 80896
    %v135 = vsel %vm133, %v56, 0
    %vm137 = vcmask 1044480
    %v139 = vsel %vm137, %v131, 0
    %v142 = vsel %vm137, %v132, 0
    %144 = vmatprep.subr.bf16.mxu0 0
    %145 = vmatpush1.bf16.msra.mxu0 0
    %146 = vmatprep.subr.bf16.mxu0 0
    %147 = vmatpush1.bf16.msra.mxu0 0
    %148 = vmatprep.subr.bf16.mxu0 0
    %149 = vmatpush1.bf16.msra.mxu0 0
    %150 = vmatprep.subr.bf16.mxu0 0
    %151 = vmatpush1.bf16.msra.mxu0 0
    %152 = vmatprep.subr.bf16.mxu0 0
    %153 = vmatpush1.bf16.msra.mxu0 0
    %154 = vmatprep.subr.bf16.mxu0 0
    %155 = vmatpush1.bf16.msra.mxu0 0
    %156 = vmatprep.subr.bf16.mxu0 0
    %157 = vmatpush1.bf16.msra.mxu0 0
    %158 = vmatprep.subr.bf16.mxu0 %v142
    %159 = vmatpush1.bf16.msra.mxu0 %v139
    %160 = vmatprep.subr.bf16.mxu0 0
    %161 = vmatpush2.bf16.msra.mxu0 0
    %162 = vmatprep.subr.bf16.mxu0 0
    %163 = vmatpush2.bf16.msra.mxu0 0
    %164 = vmatprep.subr.bf16.mxu0 0
    %165 = vmatpush2.bf16.msra.mxu0 0
    %166 = vmatprep.subr.bf16.mxu0 0
    %167 = vmatpush2.bf16.msra.mxu0 0
    %168 = vmatprep.subr.bf16.mxu0 0
    %169 = vmatpush2.bf16.msra.mxu0 0
    %170 = vmatprep.subr.bf16.mxu0 0
    %171 = vmatpush2.bf16.msra.mxu0 0
    %172 = vmatprep.subr.bf16.mxu0 0
    %173 = vmatpush2.bf16.msra.mxu0 0
    %174 = vmatprep.subr.bf16.mxu0 0
    %175 = vmatpush2.bf16.msra.mxu0 0
    %176 = vmatprep.mubr.bf16.mxu0 0
    %177 = vmatmul.mubr.bf16.gmra.mxu0 %v135
    %v178 = vpop.f32.mrf.mxu0
    %v179 = vadd.f32 %v119, %v178
    %v180 = vpop.f32.mrf.mxu0
    %v181 = vadd.f32 %v121, %v180
    %v182 = vpop.f32.mrf.mxu0
    %v183 = vpop.f32.mrf.mxu0
    %184 = vdwg.mxu0
    %v185 = vld [vmem:[%s5] sm:$0xf]
    %v188 = vunpack.c.l.s4 1983009808
    %v189 = vunpack.c.0.s8 %v188
    %v190 = vlaneseq
    %v191 = vshrl.u32 %v190, 7
    %v192 = vsub.s32 %v189, %v191
    %v193 = vrot.slane %v185, %v192
    %v194 = vcombine.high %v193, %v193
    %vm195 = vcmask 23552
    %v197 = vsel %vm195, %v60, 0
    %vm199 = vcmask 1040384
    %v200 = vsel %vm199, 4294967295, 65535
    %v201 = vsel %vm77, %v200, 0
    %v203 = vand.u32 %v193, %v201
    %v206 = vand.u32 %v194, %v201
    %208 = vmatprep.subr.bf16.mxu0 0
    %209 = vmatpush1.bf16.msra.mxu0 0
    %210 = vmatprep.subr.bf16.mxu0 0
    %211 = vmatpush1.bf16.msra.mxu0 0
    %212 = vmatprep.subr.bf16.mxu0 0
    %213 = vmatpush1.bf16.msra.mxu0 0
    %214 = vmatprep.subr.bf16.mxu0 0
    %215 = vmatpush1.bf16.msra.mxu0 0
    %216 = vmatprep.subr.bf16.mxu0 0
    %217 = vmatpush1.bf16.msra.mxu0 0
    %218 = vmatprep.subr.bf16.mxu0 0
    %219 = vmatpush1.bf16.msra.mxu0 0
    %220 = vmatprep.subr.bf16.mxu0 0
    %221 = vmatpush1.bf16.msra.mxu0 0
    %222 = vmatprep.subr.bf16.mxu0 %v206
    %223 = vmatpush1.bf16.msra.mxu0 %v203
    %224 = vmatprep.subr.bf16.mxu0 0
    %225 = vmatpush2.bf16.msra.mxu0 0
    %226 = vmatprep.subr.bf16.mxu0 0
    %227 = vmatpush2.bf16.msra.mxu0 0
    %228 = vmatprep.subr.bf16.mxu0 0
    %229 = vmatpush2.bf16.msra.mxu0 0
    %230 = vmatprep.subr.bf16.mxu0 0
    %231 = vmatpush2.bf16.msra.mxu0 0
    %232 = vmatprep.subr.bf16.mxu0 0
    %233 = vmatpush2.bf16.msra.mxu0 0
    %234 = vmatprep.subr.bf16.mxu0 0
    %235 = vmatpush2.bf16.msra.mxu0 0
    %236 = vmatprep.subr.bf16.mxu0 0
    %237 = vmatpush2.bf16.msra.mxu0 0
    %238 = vmatprep.subr.bf16.mxu0 0
    %239 = vmatpush2.bf16.msra.mxu0 0
    %240 = vmatprep.mubr.bf16.mxu0 0
    %241 = vmatmul.mubr.bf16.gmra.mxu0 %v197
    %v242 = vpop.f32.mrf.mxu0
    %v243 = vadd.f32 0.0, %v242
    %v244 = vpop.f32.mrf.mxu0
    %v245 = vadd.f32 0.0, %v244
    %v246 = vpop.f32.mrf.mxu0
    %v247 = vpop.f32.mrf.mxu0
    %248 = vdwg.mxu0
    %v249 = vadd.f32 %v179, %v243
    %v250 = vadd.f32 %v181, %v245
    %v251 = vld [vmem:[%s6] sm:$0x3]
    %v253 = vlaneseq
    %v254 = vshrl.u32 %v253, 7
    %v255 = vsub.s32 0, %v254
    %v256 = vrot.slane %v251, %v255
    %v257 = vlaneseq
    %v258 = vshrl.u32 %v257, 7
    %v259 = vsub.s32 1, %v258
    %v260 = vrot.slane %v251, %v259
    %v263 = vadd.f32 %v249, %v256
    %v264 = vadd.f32 %v250, %v260
    %v265 = vmax.f32 %v263, 0.0
    %v266 = vmax.f32 %v264, 0.0
    %v267 = vpack.c.bf16 %v265, %v265
    %v268 = vpack.c.bf16 %v266, %v266
    %v269 = vld [vmem:[#allocation3] sm:$0xff]
    %v270 = vld [vmem:[#allocation3 + $0x8] sm:$0xff]
    %v271 = vld [vmem:[#allocation3 + $0x10] sm:$0xff]
    %v272 = vld [vmem:[#allocation3 + $0x18] sm:$0xff]
    %v273 = vld [vmem:[#allocation3 + $0x20] sm:$0xff]
    %v274 = vld [vmem:[#allocation3 + $0x28] sm:$0xff]
    %v275 = vld [vmem:[#allocation3 + $0x30] sm:$0xff]
    %v276 = vld [vmem:[#allocation3 + $0x38] sm:$0xff]
    %v277 = vld [vmem:[#allocation3 + $0x40] sm:$0xff]
    %v278 = vld [vmem:[#allocation3 + $0x48] sm:$0xff]
    %v279 = vld [vmem:[#allocation3 + $0x50] sm:$0xff]
    %v280 = vld [vmem:[#allocation3 + $0x58] sm:$0xff]
    %v281 = vld [vmem:[#allocation3 + $0x60] sm:$0xff]
    %v282 = vld [vmem:[#allocation3 + $0x68] sm:$0xff]
    %v283 = vld [vmem:[#allocation3 + $0x70] sm:$0xff]
    %v284 = vld [vmem:[#allocation3 + $0x78] sm:$0xff]
    %v285 = vld [vmem:[#allocation3 + $0x80] sm:$0xff]
    %v286 = vld [vmem:[#allocation3 + $0x88] sm:$0xff]
    %v287 = vld [vmem:[#allocation3 + $0x90] sm:$0xff]
    %v288 = vld [vmem:[#allocation3 + $0x98] sm:$0xff]
    %v289 = vld [vmem:[#allocation3 + $0xa0] sm:$0xff]
    %v290 = vld [vmem:[#allocation3 + $0xa8] sm:$0xff]
    %v291 = vld [vmem:[#allocation3 + $0xb0] sm:$0xff]
    %v292 = vld [vmem:[#allocation3 + $0xb8] sm:$0xff]
    %v293 = vld [vmem:[#allocation3 + $0xc0] sm:$0xff]
    %v294 = vld [vmem:[#allocation3 + $0xc8] sm:$0xff]
    %v295 = vld [vmem:[#allocation3 + $0xd0] sm:$0xff]
    %v296 = vld [vmem:[#allocation3 + $0xd8] sm:$0xff]
    %v297 = vld [vmem:[#allocation3 + $0xe0] sm:$0xff]
    %v298 = vld [vmem:[#allocation3 + $0xe8] sm:$0xff]
    %v299 = vld [vmem:[#allocation3 + $0xf0] sm:$0xff]
    %v300 = vld [vmem:[#allocation3 + $0xf8] sm:$0xff]
    %v301 = vld [vmem:[%s8] sm:$0x3]
    %v303 = vlaneseq
    %v304 = vshrl.u32 %v303, 7
    %v305 = vsub.s32 0, %v304
    %v306 = vrot.slane %v301, %v305
    %v307 = vlaneseq
    %v308 = vshrl.u32 %v307, 7
    %v309 = vsub.s32 1, %v308
    %v310 = vrot.slane %v301, %v309
    %v345 = vunpack.c.l.b16 %v269
    %v346 = vunpack.c.h.b16 %v269
    %v347 = vunpack.c.l.b16 %v270
    %v348 = vunpack.c.h.b16 %v270
    %v349 = vunpack.c.l.b16 %v271
    %v350 = vunpack.c.h.b16 %v271
    %v351 = vunpack.c.l.b16 %v272
    %v352 = vunpack.c.h.b16 %v272
    %v353 = vunpack.c.l.b16 %v273
    %v354 = vunpack.c.h.b16 %v273
    %v355 = vunpack.c.l.b16 %v274
    %v356 = vunpack.c.h.b16 %v274
    %v357 = vunpack.c.l.b16 %v275
    %v358 = vunpack.c.h.b16 %v275
    %v359 = vunpack.c.l.b16 %v276
    %v360 = vunpack.c.h.b16 %v276
    %v361 = vunpack.c.l.b16 %v277
    %v362 = vunpack.c.h.b16 %v277
    %v363 = vunpack.c.l.b16 %v278
    %v364 = vunpack.c.h.b16 %v278
    %v365 = vunpack.c.l.b16 %v279
    %v366 = vunpack.c.h.b16 %v279
    %v367 = vunpack.c.l.b16 %v280
    %v368 = vunpack.c.h.b16 %v280
    %v369 = vunpack.c.l.b16 %v281
    %v370 = vunpack.c.h.b16 %v281
    %v371 = vunpack.c.l.b16 %v282
    %v372 = vunpack.c.h.b16 %v282
    %v373 = vunpack.c.l.b16 %v283
    %v374 = vunpack.c.h.b16 %v283
    %v375 = vunpack.c.l.b16 %v284
    %v376 = vunpack.c.h.b16 %v284
    %v377 = vunpack.c.l.b16 %v285
    %v378 = vunpack.c.h.b16 %v285
    %v379 = vunpack.c.l.b16 %v286
    %v380 = vunpack.c.h.b16 %v286
    %v381 = vunpack.c.l.b16 %v287
    %v382 = vunpack.c.h.b16 %v287
    %v383 = vunpack.c.l.b16 %v288
    %v384 = vunpack.c.h.b16 %v288
    %v385 = vunpack.c.l.b16 %v289
    %v386 = vunpack.c.h.b16 %v289
    %v387 = vunpack.c.l.b16 %v290
    %v388 = vunpack.c.h.b16 %v290
    %v389 = vunpack.c.l.b16 %v291
    %v390 = vunpack.c.h.b16 %v291
    %v391 = vunpack.c.l.b16 %v292
    %v392 = vunpack.c.h.b16 %v292
    %v393 = vunpack.c.l.b16 %v293
    %v394 = vunpack.c.h.b16 %v293
    %v395 = vunpack.c.l.b16 %v294
    %v396 = vunpack.c.h.b16 %v294
    %v397 = vunpack.c.l.b16 %v295
    %v398 = vunpack.c.h.b16 %v295
    %v399 = vunpack.c.l.b16 %v296
    %v400 = vunpack.c.h.b16 %v296
    %v401 = vunpack.c.l.b16 %v297
    %v402 = vunpack.c.h.b16 %v297
    %v403 = vunpack.c.l.b16 %v298
    %v404 = vunpack.c.h.b16 %v298
    %v405 = vunpack.c.l.b16 %v299
    %v406 = vunpack.c.h.b16 %v299
    %v407 = vunpack.c.l.b16 %v300
    %v408 = vunpack.c.h.b16 %v300
    %v409 = vpack.c.b16 %v347, %v345
    %v410 = vpack.c.b16 %v348, %v346
    %v411 = vpack.c.b16 %v351, %v349
    %v412 = vpack.c.b16 %v352, %v350
    %v413 = vpack.c.b16 %v355, %v353
    %v414 = vpack.c.b16 %v356, %v354
    %v415 = vpack.c.b16 %v359, %v357
    %v416 = vpack.c.b16 %v360, %v358
    %v417 = vpack.c.b16 %v363, %v361
    %v418 = vpack.c.b16 %v364, %v362
    %v419 = vpack.c.b16 %v367, %v365
    %v420 = vpack.c.b16 %v368, %v366
    %v421 = vpack.c.b16 %v371, %v369
    %v422 = vpack.c.b16 %v372, %v370
    %v423 = vpack.c.b16 %v375, %v373
    %v424 = vpack.c.b16 %v376, %v374
    %v425 = vpack.c.b16 %v379, %v377
    %v426 = vpack.c.b16 %v380, %v378
    %v427 = vpack.c.b16 %v383, %v381
    %v428 = vpack.c.b16 %v384, %v382
    %v429 = vpack.c.b16 %v387, %v385
    %v430 = vpack.c.b16 %v388, %v386
    %v431 = vpack.c.b16 %v391, %v389
    %v432 = vpack.c.b16 %v392, %v390
    %v433 = vpack.c.b16 %v395, %v393
    %v434 = vpack.c.b16 %v396, %v394
    %v435 = vpack.c.b16 %v399, %v397
    %v436 = vpack.c.b16 %v400, %v398
    %v437 = vpack.c.b16 %v403, %v401
    %v438 = vpack.c.b16 %v404, %v402
    %v439 = vpack.c.b16 %v407, %v405
    %v440 = vpack.c.b16 %v408, %v406
    %473 = vmatprep.subr.bf16.mxu0 %v424
    %474 = vmatpush1.bf16.msra.mxu0 %v423
    %475 = vmatprep.subr.bf16.mxu0 %v422
    %476 = vmatpush1.bf16.msra.mxu0 %v421
    %477 = vmatprep.subr.bf16.mxu0 %v420
    %478 = vmatpush1.bf16.msra.mxu0 %v419
    %479 = vmatprep.subr.bf16.mxu0 %v418
    %480 = vmatpush1.bf16.msra.mxu0 %v417
    %481 = vmatprep.subr.bf16.mxu0 %v416
    %482 = vmatpush1.bf16.msra.mxu0 %v415
    %483 = vmatprep.subr.bf16.mxu0 %v414
    %484 = vmatpush1.bf16.msra.mxu0 %v413
    %485 = vmatprep.subr.bf16.mxu0 %v412
    %486 = vmatpush1.bf16.msra.mxu0 %v411
    %487 = vmatprep.subr.bf16.mxu0 %v410
    %488 = vmatpush1.bf16.msra.mxu0 %v409
    %489 = vmatprep.subr.bf16.mxu0 %v440
    %490 = vmatpush2.bf16.msra.mxu0 %v439
    %491 = vmatprep.subr.bf16.mxu0 %v438
    %492 = vmatpush2.bf16.msra.mxu0 %v437
    %493 = vmatprep.subr.bf16.mxu0 %v436
    %494 = vmatpush2.bf16.msra.mxu0 %v435
    %495 = vmatprep.subr.bf16.mxu0 %v434
    %496 = vmatpush2.bf16.msra.mxu0 %v433
    %497 = vmatprep.subr.bf16.mxu0 %v432
    %498 = vmatpush2.bf16.msra.mxu0 %v431
    %499 = vmatprep.subr.bf16.mxu0 %v430
    %500 = vmatpush2.bf16.msra.mxu0 %v429
    %501 = vmatprep.subr.bf16.mxu0 %v428
    %502 = vmatpush2.bf16.msra.mxu0 %v427
    %503 = vmatprep.subr.bf16.mxu0 %v426
    %504 = vmatpush2.bf16.msra.mxu0 %v425
    %505 = vmatprep.mubr.bf16.mxu0 %v268
    %506 = vmatmul.mubr.bf16.gmra.mxu0 %v267
    %v507 = vpop.f32.mrf.mxu0
    %v508 = vadd.f32 %v306, %v507
    %v509 = vpop.f32.mrf.mxu0
    %v510 = vadd.f32 %v310, %v509
    %v511 = vpop.f32.mrf.mxu0
    %v512 = vpop.f32.mrf.mxu0
    %513 = vdwg.mxu0
    %v514 = vmax.f32 %v508, 0.0
    %v515 = vmax.f32 %v510, 0.0
    %v516 = vpack.c.bf16 %v514, %v514
    %v517 = vpack.c.bf16 %v515, %v515
    %v518 = vld [vmem:[%s9] sm:$0xf]
    %v519 = vld [vmem:[%s9 + $0x4] sm:$0xf]
    %v520 = vld [vmem:[%s9 + $0x8] sm:$0xf]
    %v521 = vld [vmem:[%s9 + $0xc] sm:$0xf]
    %v522 = vld [vmem:[%s9 + $0x10] sm:$0xf]
    %v523 = vld [vmem:[%s9 + $0x14] sm:$0xf]
    %v524 = vld [vmem:[%s9 + $0x18] sm:$0xf]
    %v525 = vld [vmem:[%s9 + $0x1c] sm:$0xf]
    %v526 = vld [vmem:[%s9 + $0x20] sm:$0xf]
    %v527 = vld [vmem:[%s9 + $0x24] sm:$0xf]
    %v528 = vld [vmem:[%s9 + $0x28] sm:$0xf]
    %v529 = vld [vmem:[%s9 + $0x2c] sm:$0xf]
    %v530 = vld [vmem:[%s9 + $0x30] sm:$0xf]
    %v531 = vld [vmem:[%s9 + $0x34] sm:$0xf]
    %v532 = vld [vmem:[%s9 + $0x38] sm:$0xf]
    %v533 = vld [vmem:[%s9 + $0x3c] sm:$0xf]
    %v534 = vld [vmem:[%s9 + $0x40] sm:$0xf]
    %v535 = vld [vmem:[%s9 + $0x44] sm:$0xf]
    %v536 = vld [vmem:[%s9 + $0x48] sm:$0xf]
    %v537 = vld [vmem:[%s9 + $0x4c] sm:$0xf]
    %v538 = vld [vmem:[%s9 + $0x50] sm:$0xf]
    %v539 = vld [vmem:[%s9 + $0x54] sm:$0xf]
    %v540 = vld [vmem:[%s9 + $0x58] sm:$0xf]
    %v541 = vld [vmem:[%s9 + $0x5c] sm:$0xf]
    %v542 = vld [vmem:[%s9 + $0x60] sm:$0xf]
    %v543 = vld [vmem:[%s9 + $0x64] sm:$0xf]
    %v544 = vld [vmem:[%s9 + $0x68] sm:$0xf]
    %v545 = vld [vmem:[%s9 + $0x6c] sm:$0xf]
    %v546 = vld [vmem:[%s9 + $0x70] sm:$0xf]
    %v547 = vld [vmem:[%s9 + $0x74] sm:$0xf]
    %v548 = vld [vmem:[%s9 + $0x78] sm:$0xf]
    %v549 = vld [vmem:[%s9 + $0x7c] sm:$0xf]
    %v550 = vld [vmem:[#allocation2] sm:$0x1]
    %v552 = vlaneseq
    %v553 = vshrl.u32 %v552, 7
    %v554 = vsub.s32 0, %v553
    %v555 = vrot.slane %v550, %v554
    %v589 = vunpack.c.l.b16 %v518
    %v590 = vunpack.c.l.b16 %v519
    %v591 = vunpack.c.l.b16 %v520
    %v592 = vunpack.c.l.b16 %v521
    %v593 = vunpack.c.l.b16 %v522
    %v594 = vunpack.c.l.b16 %v523
    %v595 = vunpack.c.l.b16 %v524
    %v596 = vunpack.c.l.b16 %v525
    %v597 = vunpack.c.l.b16 %v526
    %v598 = vunpack.c.l.b16 %v527
    %v599 = vunpack.c.l.b16 %v528
    %v600 = vunpack.c.l.b16 %v529
    %v601 = vunpack.c.l.b16 %v530
    %v602 = vunpack.c.l.b16 %v531
    %v603 = vunpack.c.l.b16 %v532
    %v604 = vunpack.c.l.b16 %v533
    %v605 = vunpack.c.l.b16 %v534
    %v606 = vunpack.c.l.b16 %v535
    %v607 = vunpack.c.l.b16 %v536
    %v608 = vunpack.c.l.b16 %v537
    %v609 = vunpack.c.l.b16 %v538
    %v610 = vunpack.c.l.b16 %v539
    %v611 = vunpack.c.l.b16 %v540
    %v612 = vunpack.c.l.b16 %v541
    %v613 = vunpack.c.l.b16 %v542
    %v614 = vunpack.c.l.b16 %v543
    %v615 = vunpack.c.l.b16 %v544
    %v616 = vunpack.c.l.b16 %v545
    %v617 = vunpack.c.l.b16 %v546
    %v618 = vunpack.c.l.b16 %v547
    %v619 = vunpack.c.l.b16 %v548
    %v620 = vunpack.c.l.b16 %v549
    %v621 = vpack.c.b16 %v590, %v589
    %v622 = vpack.c.b16 %v592, %v591
    %v623 = vpack.c.b16 %v594, %v593
    %v624 = vpack.c.b16 %v596, %v595
    %v625 = vpack.c.b16 %v598, %v597
    %v626 = vpack.c.b16 %v600, %v599
    %v627 = vpack.c.b16 %v602, %v601
    %v628 = vpack.c.b16 %v604, %v603
    %v629 = vpack.c.b16 %v606, %v605
    %v630 = vpack.c.b16 %v608, %v607
    %v631 = vpack.c.b16 %v610, %v609
    %v632 = vpack.c.b16 %v612, %v611
    %v633 = vpack.c.b16 %v614, %v613
    %v634 = vpack.c.b16 %v616, %v615
    %v635 = vpack.c.b16 %v618, %v617
    %v636 = vpack.c.b16 %v620, %v619
    %653 = vmatprep.subr.bf16.mxu0 0
    %654 = vmatpush1.bf16.msra.mxu0 %v628
    %655 = vmatprep.subr.bf16.mxu0 0
    %656 = vmatpush1.bf16.msra.mxu0 %v627
    %657 = vmatprep.subr.bf16.mxu0 0
    %658 = vmatpush1.bf16.msra.mxu0 %v626
    %659 = vmatprep.subr.bf16.mxu0 0
    %660 = vmatpush1.bf16.msra.mxu0 %v625
    %661 = vmatprep.subr.bf16.mxu0 0
    %662 = vmatpush1.bf16.msra.mxu0 %v624
    %663 = vmatprep.subr.bf16.mxu0 0
    %664 = vmatpush1.bf16.msra.mxu0 %v623
    %665 = vmatprep.subr.bf16.mxu0 0
    %666 = vmatpush1.bf16.msra.mxu0 %v622
    %667 = vmatprep.subr.bf16.mxu0 0
    %668 = vmatpush1.bf16.msra.mxu0 %v621
    %669 = vmatprep.subr.bf16.mxu0 0
    %670 = vmatpush2.bf16.msra.mxu0 %v636
    %671 = vmatprep.subr.bf16.mxu0 0
    %672 = vmatpush2.bf16.msra.mxu0 %v635
    %673 = vmatprep.subr.bf16.mxu0 0
    %674 = vmatpush2.bf16.msra.mxu0 %v634
    %675 = vmatprep.subr.bf16.mxu0 0
    %676 = vmatpush2.bf16.msra.mxu0 %v633
    %677 = vmatprep.subr.bf16.mxu0 0
    %678 = vmatpush2.bf16.msra.mxu0 %v632
    %679 = vmatprep.subr.bf16.mxu0 0
    %680 = vmatpush2.bf16.msra.mxu0 %v631
    %681 = vmatprep.subr.bf16.mxu0 0
    %682 = vmatpush2.bf16.msra.mxu0 %v630
    %683 = vmatprep.subr.bf16.mxu0 0
    %684 = vmatpush2.bf16.msra.mxu0 %v629
    %685 = vmatprep.mubr.bf16.mxu0 %v517
    %686 = vmatmul.mubr.bf16.gmra.mxu0 %v516
    %v687 = vpop.f32.mrf.mxu0
    %v688 = vadd.f32 %v555, %v687
    %v689 = vpop.f32.mrf.mxu0
    %v690 = vpop.f32.mrf.mxu0
    %v691 = vpop.f32.mrf.mxu0
    %692 = vdwg.mxu0
    %vm693 = vcmask 7168
    %694 = vst.msk [vmem:[%s11] sm:$0xff] %vm693, %v688
    // Predicated region
    $region50: #{tpu_custom_call.1} parent=1 // pred_check
      _
    $region51: #{tpu_custom_call.1} parent=1 // pred_check_branch
      %696 = sbr.rel (0) target = $region53
    $region52: #{tpu_custom_call.1} parent=1 // pred_region
      _
    $region53: #{tpu_custom_call.1} parent=1 // pred_fallthru
      _
    // Predicated region
    $region54: #{tpu_custom_call.1} parent=1 // pred_check
      _
    $region55: #{tpu_custom_call.1} parent=1 // pred_check_branch
      %698 = sbr.rel (0) target = $region57
    $region56: #{tpu_custom_call.1} parent=1 // pred_region
      _
    $region57: #{tpu_custom_call.1} parent=1 // pred_fallthru
      _
    %699 = vsyncpa [#allocation4], 1

</llo_original>
